<compile_context>
chip_gen: v7x
topology: tpu7x:2x2x1
jax: 0.10.0
libtpu: 0.0.40
codegen_flags: <defaults>
</compile_context>

<pallas_src>
import functools
import math

import jax
import jax.numpy as jnp
import numpy as np
from jax.experimental import pallas as pl
from jax.experimental.pallas import tpu as pltpu


def _round_up(a, m):
    return (a + m - 1) // m * m


# ---------------------------------------------------------------------------
# Pallas kernel
# ---------------------------------------------------------------------------
def _kan_linear_kernel(x_ref, coef_ref, w_ref, o_ref, *scratch, in_features,
                       n_knots, spline_order, multi_out, use_lhs_scratch):
    """Fused KANLinear forward for one (row tile[, out-col tile]) grid step.

    x_ref    : (TM, IN)          input rows (f32)
    coef_ref : (R, K)            lane-contiguous per-slot knot coefficients
    w_ref    : (K, TN)           fused weight [ws_0..ws_{nc-1} ; 0 ; base^T]
    o_ref    : (TM, TN)          output tile (lane-dense, zero-padded cols)
    scratch  : xm (TM,K) f32, bs (TM,K) f32[, lhs (TM,K) mxu dtype]
    """
    IN = in_features
    K = n_knots * IN
    n_slots = n_knots - 1

    if use_lhs_scratch:
        xm_ref, bs_ref, lhs_ref = scratch
    else:
        xm_ref, bs_ref = scratch
        lhs_ref = None

    def build_bases():
        x = x_ref[...].astype(jnp.float32)                     # (TM, IN)

        # Replicate x across all n_knots lane blocks (write-only stores, once
        # per row tile), then subtract the per-slot left knot in ONE
        # full-width pass:  xm[:, s*IN + f] = x[:, f] - g_lo[s, f].
        for s in range(n_knots):
            xm_ref[:, s * IN:(s + 1) * IN] = x
        xm_ref[...] = xm_ref[...] - coef_ref[0:1, :]

        # Order-0 bases: one full-width compare (the spare SiLU slot and the
        # workspace slots compare false / decay to 0).
        xm = xm_ref[...]
        bs_ref[...] = jnp.logical_and(
            xm >= 0.0, xm < coef_ref[1:2, :]).astype(jnp.float32)

        # Cox-de-Boor recursion: one full-width VPU pass + one XLU lane-roll
        # per level.  Invalid slots have zero coefficients, so stale values
        # (and the roll wrap-around slot) contribute exactly 0 -> no masking.
        for k in range(1, spline_order + 1):
            r = 2 + 3 * (k - 1)
            inv_l = coef_ref[r:r + 1, :]        # 1/(g[t+k]   - g[t])
            hip = coef_ref[r + 1:r + 2, :]      # g[t+k+1] - g[t]
            inv_r = coef_ref[r + 2:r + 3, :]    # 1/(g[t+k+1] - g[t+1])
            xm = xm_ref[...]
            bs = bs_ref[...]
            nxt = pltpu.roll(bs, shift=K - IN, axis=1)   # slot t <- slot t+1
            bs_ref[...] = (xm * inv_l) * bs + ((hip - xm) * inv_r) * nxt

        # SiLU(x) base branch into the spare last lane block (fused matmul).
        bs_ref[:, n_slots * IN:] = x * jax.nn.sigmoid(x)

        # Materialize the MXU LHS in its compute dtype once per row tile
        # (only needed when the output-column axis is tiled).
        if use_lhs_scratch:
            lhs_ref[...] = bs_ref[...].astype(lhs_ref.dtype)

    if multi_out:
        # Bases depend only on the row tile; the out-col axis is innermost
        # ("arbitrary"), so build them once per row tile and reuse.
        @pl.when(pl.program_id(1) == 0)
        def _():
            build_bases()
    else:
        build_bases()

    # ---- one fused MXU matmul: [bases | 0 | SiLU(x)] @ [ws ; 0 ; base^T] ----
    lhs = lhs_ref[...] if use_lhs_scratch else bs_ref[...].astype(w_ref.dtype)
    o_ref[...] = jnp.dot(lhs, w_ref[...],
                         preferred_element_type=jnp.float32).astype(o_ref.dtype)


# ---------------------------------------------------------------------------
# Wrapper
# ---------------------------------------------------------------------------
def kan_linear_forward(x, grid_buf, base_weight, spline_weight, spline_scaler,
                       *, grid_size, spline_order, tm_max=256, tn=None,
                       mxu_dtype=jnp.bfloat16, out_dtype=jnp.float32,
                       max_resident_cols=2048,
                       vmem_budget_bytes=24 * 1024 * 1024):
    """KANLinear.forward(x) with a fused Pallas TPU kernel.

    x             : (..., in_features)
    grid_buf      : (in_features, grid_size + 2*spline_order + 1)
    base_weight   : (out_features, in_features)
    spline_weight : (out_features, in_features, grid_size + spline_order)
    spline_scaler : (out_features, in_features)
    """
    out_f, in_f = base_weight.shape
    n_coef = grid_size + spline_order
    n_knots = grid_size + 2 * spline_order + 1
    n_slots = n_knots - 1
    K = n_knots * in_f
    coef_rows = 2 + 3 * spline_order

    orig_shape = x.shape
    xf = x.reshape(-1, in_f).astype(jnp.float32)
    n_rows = xf.shape[0]

    # ---- row tiling: never compute on more padding than needed --------------
    tm = min(tm_max, _round_up(max(n_rows, 1), 8))
    if n_rows >= 16 and pl.cdiv(n_rows, tm) == 1:
        # Split a single row tile in two so v7x's second TensorCore gets work.
        tm = _round_up(pl.cdiv(n_rows, 2), 8)

    mxu_bytes = np.dtype(mxu_dtype).itemsize
    out_bytes = np.dtype(out_dtype).itemsize
    cast_lhs_possible = np.dtype(mxu_dtype) != np.dtype(jnp.float32)

    def vmem_need(tm_, tn_):
        need = 2 * tm_ * in_f * 4            # x row tile (double buffered)
        need += 2 * coef_rows * K * 4        # coefficient rows
        need += 2 * K * tn_ * mxu_bytes      # fused weight block
        need += 2 * tm_ * tn_ * out_bytes    # output tile
        need += 2 * tm_ * K * 4              # xm + bases scratch
        if cast_lhs_possible:
            need += tm_ * K * mxu_bytes      # cast-LHS scratch (tiled path)
        return need

    # ---- output-column tiling: keep the fused weight resident when it fits --
    if tn is None:
        resident = _round_up(out_f, 128)
        if (resident <= max_resident_cols
                and vmem_need(tm, resident) <= vmem_budget_bytes):
            tn = resident                    # 1-D grid, W fetched once
        elif vmem_need(tm, 256) <= vmem_budget_bytes:
            tn = 256                         # fill v6e/v7x 256-wide MXU
        else:
            tn = 128                         # v5e-friendly minimum
    assert tn % 128 == 0
    while vmem_need(tm, tn) > vmem_budget_bytes and tm > 8:
        tm = _round_up(tm // 2, 8)

    out_p = _round_up(out_f, tn)
    n_out_tiles = out_p // tn
    multi_out = n_out_tiles > 1
    use_lhs_scratch = multi_out and cast_lhs_possible

    n_row_tiles = pl.cdiv(n_rows, tm)
    n_pad_rows = n_row_tiles * tm
    if n_pad_rows != n_rows:
        xf = jnp.pad(xf, ((0, n_pad_rows - n_rows), (0, 0)))

    # ---- lane-contiguous coefficient rows (per-slot knot data) --------------
    #   row 0            : g_lo          (left knot of slot t; huge for SiLU slot)
    #   row 1            : g_hi - g_lo   (order-0 interval width)
    #   rows 2+3(k-1)... : inv_l_k, (hi_k - g_lo), inv_r_k for recursion level k
    # Invalid slots get zero coefficients -> they stay exactly 0 and multiply
    # zero rows of the fused weight.  Zero-width knot intervals are clamped to
    # contribute 0 (reference would produce inf/nan for degenerate grids).
    gk = grid_buf.astype(jnp.float32)                        # (in_f, n_knots)
    big = jnp.full((in_f,), 1e30, jnp.float32)
    zero = jnp.zeros((in_f,), jnp.float32)

    g_lo = jnp.concatenate([gk[:, t] for t in range(n_slots)] + [big])
    g_hi = jnp.concatenate([gk[:, t + 1] for t in range(n_slots)] + [-big])
    rows = [g_lo, g_hi - g_lo]
    for k in range(1, spline_order + 1):
        inv_l, hip, inv_r = [], [], []
        for t in range(n_knots):
            if t < n_slots - k:
                dl = gk[:, t + k] - gk[:, t]
                dr = gk[:, t + k + 1] - gk[:, t + 1]
                inv_l.append(jnp.where(dl == 0, 0.0, 1.0 / dl))
                inv_r.append(jnp.where(dr == 0, 0.0, 1.0 / dr))
                hip.append(gk[:, t + k + 1] - gk[:, t])
            else:
                inv_l.append(zero)
                inv_r.append(zero)
                hip.append(zero)
        rows += [jnp.concatenate(inv_l), jnp.concatenate(hip),
                 jnp.concatenate(inv_r)]
    coef = jnp.stack(rows, axis=0)                           # (coef_rows, K)

    # ---- fused weight: [ws_0 ; ... ; ws_{n_coef-1} ; 0 rows ; base_weight^T] -
    scaled = (spline_weight * spline_scaler[..., None]).astype(jnp.float32)
    ws2d = jnp.transpose(scaled, (2, 1, 0)).reshape(n_coef * in_f, out_f)
    w_pad = jnp.zeros((K, out_p), jnp.float32)
    w_pad = w_pad.at[:n_coef * in_f, :out_f].set(ws2d)
    w_pad = w_pad.at[n_slots * in_f:, :out_f].set(
        base_weight.T.astype(jnp.float32))
    w_pad = w_pad.astype(mxu_dtype)

    # ---- grid / specs --------------------------------------------------------
    if multi_out:
        grid = (n_row_tiles, n_out_tiles)
        in_specs = [
            pl.BlockSpec((tm, in_f), lambda i, j: (i, 0)),
            pl.BlockSpec((coef_rows, K), lambda i, j: (0, 0)),
            pl.BlockSpec((K, tn), lambda i, j: (0, j)),
        ]
        out_specs = pl.BlockSpec((tm, tn), lambda i, j: (i, j))
        dim_sem = ("parallel", "arbitrary")
    else:
        grid = (n_row_tiles,)
        in_specs = [
            pl.BlockSpec((tm, in_f), lambda i: (i, 0)),
            pl.BlockSpec((coef_rows, K), lambda i: (0, 0)),
            pl.BlockSpec((K, tn), lambda i: (0, 0)),
        ]
        out_specs = pl.BlockSpec((tm, tn), lambda i: (i, 0))
        dim_sem = ("parallel",)

    scratch_shapes = [pltpu.VMEM((tm, K), jnp.float32),      # xm = rep(x)-g_lo
                      pltpu.VMEM((tm, K), jnp.float32)]      # bases | SiLU
    if use_lhs_scratch:
        scratch_shapes.append(pltpu.VMEM((tm, K), mxu_dtype))

    kernel = functools.partial(
        _kan_linear_kernel, in_features=in_f, n_knots=n_knots,
        spline_order=spline_order, multi_out=multi_out,
        use_lhs_scratch=use_lhs_scratch)

    vmem_limit = int(min(64 * 1024 * 1024,
                         max(2 * vmem_need(tm, tn), 16 * 1024 * 1024)))

    out = pl.pallas_call(
        kernel,
        out_shape=jax.ShapeDtypeStruct((n_pad_rows, out_p), out_dtype),
        grid_spec=pltpu.PrefetchScalarGridSpec(
            num_scalar_prefetch=0, grid=grid, in_specs=in_specs,
            out_specs=out_specs, scratch_shapes=scratch_shapes),
        compiler_params=pltpu.CompilerParams(
            dimension_semantics=dim_sem, vmem_limit_bytes=vmem_limit),
    )(xf, coef, w_pad)

    return out[:n_rows, :out_f].reshape(*orig_shape[:-1], out_f)


# ---------------------------------------------------------------------------
# Pure-JAX reference (mirrors the PyTorch forward) for correctness check
# ---------------------------------------------------------------------------
def _b_splines_ref(x, grid_buf, spline_order):
    xg = x[:, :, None]                                       # (N, in, 1)
    bases = jnp.logical_and(xg >= grid_buf[:, :-1],
                            xg < grid_buf[:, 1:]).astype(x.dtype)
    for k in range(1, spline_order + 1):
        bases = ((xg - grid_buf[:, :-(k + 1)])
                 / (grid_buf[:, k:-1] - grid_buf[:, :-(k + 1)]) * bases[:, :, :-1]
                 + (grid_buf[:, k + 1:] - xg)
                 / (grid_buf[:, k + 1:] - grid_buf[:, 1:-k]) * bases[:, :, 1:])
    return bases


def kan_linear_reference(x, grid_buf, base_weight, spline_weight, spline_scaler,
                         *, grid_size, spline_order):
    out_f, in_f = base_weight.shape
    orig_shape = x.shape
    xf = x.reshape(-1, in_f)
    base_out = jax.nn.silu(xf) @ base_weight.T
    bases = _b_splines_ref(xf, grid_buf, spline_order)       # (N, in, n_coef)
    scaled = spline_weight * spline_scaler[..., None]        # (out, in, n_coef)
    spline_out = bases.reshape(xf.shape[0], -1) @ scaled.reshape(out_f, -1).T
    return (base_out + spline_out).reshape(*orig_shape[:-1], out_f)


# ---------------------------------------------------------------------------
# Main
# ---------------------------------------------------------------------------
if __name__ == "__main__":
    grid_size, spline_order = 5, 3
    grid_range = (-1.0, 1.0)

    def make_grid(in_features):
        h = (grid_range[1] - grid_range[0]) / grid_size
        knots = (jnp.arange(-spline_order, grid_size + spline_order + 1,
                            dtype=jnp.float32) * h + grid_range[0])
        return jnp.broadcast_to(knots, (in_features, knots.shape[0]))

    def kaiming_uniform(key, shape, a):
        fan_in = shape[1]
        gain = math.sqrt(2.0 / (1.0 + a * a))
        bound = gain * math.sqrt(3.0 / fan_in)
        return jax.random.uniform(key, shape, jnp.float32, -bound, bound)

    def make_params(key, in_features, out_features):
        kb, ks, kw = jax.random.split(key, 3)
        base_w = kaiming_uniform(kb, (out_features, in_features), math.sqrt(5.0))
        scaler = kaiming_uniform(ks, (out_features, in_features), math.sqrt(5.0))
        # TODO(synk): torch's lstsq-based curve2coeff spline_weight init is
        # replaced by a small deterministic uniform init (same shape/scale);
        # the forward math itself is unchanged.
        spline_w = jax.random.uniform(
            kw, (out_features, in_features, grid_size + spline_order),
            jnp.float32, -0.02, 0.02)
        return base_w, spline_w, scaler

    key = jax.random.PRNGKey(0)
    k1, k2, kx1, kx2 = jax.random.split(key, 4)

    # --- config 1: KANLinear(32 -> 16), x: (2, 8, 32), resident-W 1-D grid ---
    in_f, out_f = 32, 16
    grid_buf = make_grid(in_f)
    base_w, spline_w, scaler = make_params(k1, in_f, out_f)
    x = jax.random.uniform(kx1, (2, 8, in_f), jnp.float32, -0.95, 0.95)
    ref = kan_linear_reference(x, grid_buf, base_w, spline_w, scaler,
                               grid_size=grid_size, spline_order=spline_order)

    out_f32 = jax.block_until_ready(kan_linear_forward(
        x, grid_buf, base_w, spline_w, scaler, grid_size=grid_size,
        spline_order=spline_order, mxu_dtype=jnp.float32))
    np.testing.assert_allclose(np.asarray(out_f32), np.asarray(ref),
                               rtol=1e-4, atol=1e-4)

    out_bf16 = jax.block_until_ready(kan_linear_forward(
        x, grid_buf, base_w, spline_w, scaler, grid_size=grid_size,
        spline_order=spline_order))
    np.testing.assert_allclose(np.asarray(out_bf16), np.asarray(ref),
                               rtol=5e-2, atol=5e-2)
    assert out_bf16.shape == (2, 8, out_f)

    # --- config 2: tiled-output fallback (multi out tiles + ragged rows) -----
    in_f2, out_f2 = 32, 320
    grid_buf2 = make_grid(in_f2)
    base_w2, spline_w2, scaler2 = make_params(k2, in_f2, out_f2)
    x2 = jax.random.uniform(kx2, (3, 7, in_f2), jnp.float32, -0.95, 0.95)
    ref2 = kan_linear_reference(x2, grid_buf2, base_w2, spline_w2, scaler2,
                                grid_size=grid_size, spline_order=spline_order)
    out2 = jax.block_until_ready(kan_linear_forward(
        x2, grid_buf2, base_w2, spline_w2, scaler2, grid_size=grid_size,
        spline_order=spline_order, tn=128))
    np.testing.assert_allclose(np.asarray(out2), np.asarray(ref2),
                               rtol=5e-2, atol=5e-2)
    assert out2.shape == (3, 7, out_f2)

    print("KERNEL_OK")
</pallas_src>

<mosaic_0001>
module attributes {stable_mosaic.version = 11 : i64} {
  func.func @_kan_linear_kernel(%arg0: i32, %arg1: memref<8x32xf32, #tpu.memory_space<vmem>>, %arg2: memref<11x384xf32, #tpu.memory_space<vmem>>, %arg3: memref<384x128xf32, #tpu.memory_space<vmem>>, %arg4: memref<8x128xf32, #tpu.memory_space<vmem>>, %arg5: memref<8x384xf32, #tpu.memory_space<vmem>>, %arg6: memref<8x384xf32, #tpu.memory_space<vmem>>) attributes {dimension_semantics = [#tpu.dimension_semantics<parallel>], iteration_bounds = array<i64: 2>, scalar_prefetch = 0 : i64, scratch_operands = 2 : i64, tpu.core_type = #tpu.core_type<tc>, window_params = [{transform_indices = @transform_0, window_bounds = array<i64: 8, 32>}, {pipeline_mode = #tpu.pipeline_mode<synchronous>, transform_indices = @transform_1, window_bounds = array<i64: 11, 384>}, {pipeline_mode = #tpu.pipeline_mode<synchronous>, transform_indices = @transform_2, window_bounds = array<i64: 384, 128>}, {transform_indices = @transform_3, window_bounds = array<i64: 8, 128>}]} {
    %c0 = arith.constant 0 : index
    %c0_0 = arith.constant 0 : index
    %0 = vector.load %arg1[%c0, %c0_0] : memref<8x32xf32, #tpu.memory_space<vmem>>, vector<8x32xf32>
    %c0_1 = arith.constant 0 : index
    %c0_2 = arith.constant 0 : index
    %1 = vector.load %arg5[%c0_1, %c0_2] : memref<8x384xf32, #tpu.memory_space<vmem>>, vector<8x32xf32>
    tpu.vector_store %arg5[%c0_1, %c0_2], %0 {strides = array<i32>} : memref<8x384xf32, #tpu.memory_space<vmem>>, vector<8x32xf32>,
    %c0_3 = arith.constant 0 : index
    %c32 = arith.constant 32 : index
    %2 = vector.load %arg5[%c0_3, %c32] : memref<8x384xf32, #tpu.memory_space<vmem>>, vector<8x32xf32>
    tpu.vector_store %arg5[%c0_3, %c32], %0 {strides = array<i32>} : memref<8x384xf32, #tpu.memory_space<vmem>>, vector<8x32xf32>,
    %c0_4 = arith.constant 0 : index
    %c64 = arith.constant 64 : index
    %3 = vector.load %arg5[%c0_4, %c64] : memref<8x384xf32, #tpu.memory_space<vmem>>, vector<8x32xf32>
    tpu.vector_store %arg5[%c0_4, %c64], %0 {strides = array<i32>} : memref<8x384xf32, #tpu.memory_space<vmem>>, vector<8x32xf32>,
    %c0_5 = arith.constant 0 : index
    %c96 = arith.constant 96 : index
    %4 = vector.load %arg5[%c0_5, %c96] : memref<8x384xf32, #tpu.memory_space<vmem>>, vector<8x32xf32>
    tpu.vector_store %arg5[%c0_5, %c96], %0 {strides = array<i32>} : memref<8x384xf32, #tpu.memory_space<vmem>>, vector<8x32xf32>,
    %c0_6 = arith.constant 0 : index
    %c128 = arith.constant 128 : index
    %5 = vector.load %arg5[%c0_6, %c128] : memref<8x384xf32, #tpu.memory_space<vmem>>, vector<8x32xf32>
    tpu.vector_store %arg5[%c0_6, %c128], %0 {strides = array<i32>} : memref<8x384xf32, #tpu.memory_space<vmem>>, vector<8x32xf32>,
    %c0_7 = arith.constant 0 : index
    %c160 = arith.constant 160 : index
    %6 = vector.load %arg5[%c0_7, %c160] : memref<8x384xf32, #tpu.memory_space<vmem>>, vector<8x32xf32>
    tpu.vector_store %arg5[%c0_7, %c160], %0 {strides = array<i32>} : memref<8x384xf32, #tpu.memory_space<vmem>>, vector<8x32xf32>,
    %c0_8 = arith.constant 0 : index
    %c192 = arith.constant 192 : index
    %7 = vector.load %arg5[%c0_8, %c192] : memref<8x384xf32, #tpu.memory_space<vmem>>, vector<8x32xf32>
    tpu.vector_store %arg5[%c0_8, %c192], %0 {strides = array<i32>} : memref<8x384xf32, #tpu.memory_space<vmem>>, vector<8x32xf32>,
    %c0_9 = arith.constant 0 : index
    %c224 = arith.constant 224 : index
    %8 = vector.load %arg5[%c0_9, %c224] : memref<8x384xf32, #tpu.memory_space<vmem>>, vector<8x32xf32>
    tpu.vector_store %arg5[%c0_9, %c224], %0 {strides = array<i32>} : memref<8x384xf32, #tpu.memory_space<vmem>>, vector<8x32xf32>,
    %c0_10 = arith.constant 0 : index
    %c256 = arith.constant 256 : index
    %9 = vector.load %arg5[%c0_10, %c256] : memref<8x384xf32, #tpu.memory_space<vmem>>, vector<8x32xf32>
    tpu.vector_store %arg5[%c0_10, %c256], %0 {strides = array<i32>} : memref<8x384xf32, #tpu.memory_space<vmem>>, vector<8x32xf32>,
    %c0_11 = arith.constant 0 : index
    %c288 = arith.constant 288 : index
    %10 = vector.load %arg5[%c0_11, %c288] : memref<8x384xf32, #tpu.memory_space<vmem>>, vector<8x32xf32>
    tpu.vector_store %arg5[%c0_11, %c288], %0 {strides = array<i32>} : memref<8x384xf32, #tpu.memory_space<vmem>>, vector<8x32xf32>,
    %c0_12 = arith.constant 0 : index
    %c320 = arith.constant 320 : index
    %11 = vector.load %arg5[%c0_12, %c320] : memref<8x384xf32, #tpu.memory_space<vmem>>, vector<8x32xf32>
    tpu.vector_store %arg5[%c0_12, %c320], %0 {strides = array<i32>} : memref<8x384xf32, #tpu.memory_space<vmem>>, vector<8x32xf32>,
    %c0_13 = arith.constant 0 : index
    %c352 = arith.constant 352 : index
    %12 = vector.load %arg5[%c0_13, %c352] : memref<8x384xf32, #tpu.memory_space<vmem>>, vector<8x32xf32>
    tpu.vector_store %arg5[%c0_13, %c352], %0 {strides = array<i32>} : memref<8x384xf32, #tpu.memory_space<vmem>>, vector<8x32xf32>,
    %c0_14 = arith.constant 0 : index
    %c0_15 = arith.constant 0 : index
    %13 = vector.load %arg5[%c0_14, %c0_15] : memref<8x384xf32, #tpu.memory_space<vmem>>, vector<8x384xf32>
    %c0_16 = arith.constant 0 : index
    %c0_17 = arith.constant 0 : index
    %14 = vector.load %arg2[%c0_16, %c0_17] : memref<11x384xf32, #tpu.memory_space<vmem>>, vector<1x384xf32>
    %15 = vector.broadcast %14 : vector<1x384xf32> to vector<8x384xf32>
    %16 = arith.subf %13, %15 : vector<8x384xf32>
    %c0_18 = arith.constant 0 : index
    %c0_19 = arith.constant 0 : index
    %17 = vector.load %arg5[%c0_18, %c0_19] : memref<8x384xf32, #tpu.memory_space<vmem>>, vector<8x384xf32>
    tpu.vector_store %arg5[%c0_18, %c0_19], %16 {strides = array<i32>} : memref<8x384xf32, #tpu.memory_space<vmem>>, vector<8x384xf32>,
    %c0_20 = arith.constant 0 : index
    %c0_21 = arith.constant 0 : index
    %18 = vector.load %arg5[%c0_20, %c0_21] : memref<8x384xf32, #tpu.memory_space<vmem>>, vector<8x384xf32>
    %cst = arith.constant 0.000000e+00 : f32
    %19 = vector.broadcast %cst : f32 to vector<8x384xf32>
    %20 = arith.cmpf oge, %18, %19 : vector<8x384xf32>
    %c1 = arith.constant 1 : index
    %c0_22 = arith.constant 0 : index
    %21 = vector.load %arg2[%c1, %c0_22] : memref<11x384xf32, #tpu.memory_space<vmem>>, vector<1x384xf32>
    %22 = vector.broadcast %21 : vector<1x384xf32> to vector<8x384xf32>
    %23 = arith.cmpf olt, %18, %22 : vector<8x384xf32>
    %24 = arith.andi %20, %23 : vector<8x384xi1>
    %25 = arith.extui %24 : vector<8x384xi1> to vector<8x384xi32>
    %26 = arith.sitofp %25 : vector<8x384xi32> to vector<8x384xf32>
    %c0_23 = arith.constant 0 : index
    %c0_24 = arith.constant 0 : index
    %27 = vector.load %arg6[%c0_23, %c0_24] : memref<8x384xf32, #tpu.memory_space<vmem>>, vector<8x384xf32>
    tpu.vector_store %arg6[%c0_23, %c0_24], %26 {strides = array<i32>} : memref<8x384xf32, #tpu.memory_space<vmem>>, vector<8x384xf32>,
    %c2 = arith.constant 2 : index
    %c0_25 = arith.constant 0 : index
    %28 = vector.load %arg2[%c2, %c0_25] : memref<11x384xf32, #tpu.memory_space<vmem>>, vector<1x384xf32>
    %c3 = arith.constant 3 : index
    %c0_26 = arith.constant 0 : index
    %29 = vector.load %arg2[%c3, %c0_26] : memref<11x384xf32, #tpu.memory_space<vmem>>, vector<1x384xf32>
    %c4 = arith.constant 4 : index
    %c0_27 = arith.constant 0 : index
    %30 = vector.load %arg2[%c4, %c0_27] : memref<11x384xf32, #tpu.memory_space<vmem>>, vector<1x384xf32>
    %c0_28 = arith.constant 0 : index
    %c0_29 = arith.constant 0 : index
    %31 = vector.load %arg5[%c0_28, %c0_29] : memref<8x384xf32, #tpu.memory_space<vmem>>, vector<8x384xf32>
    %c0_30 = arith.constant 0 : index
    %c0_31 = arith.constant 0 : index
    %32 = vector.load %arg6[%c0_30, %c0_31] : memref<8x384xf32, #tpu.memory_space<vmem>>, vector<8x384xf32>
    %c352_i32 = arith.constant 352 : i32
    %33 = tpu.dynamic_rotate %32 by %c352_i32 dim 1 : vector<8x384xf32>, i32 -> vector<8x384xf32>
    %34 = vector.broadcast %28 : vector<1x384xf32> to vector<8x384xf32>
    %35 = arith.mulf %31, %34 : vector<8x384xf32>
    %36 = arith.mulf %35, %32 : vector<8x384xf32>
    %37 = vector.broadcast %29 : vector<1x384xf32> to vector<8x384xf32>
    %38 = arith.subf %37, %31 : vector<8x384xf32>
    %39 = vector.broadcast %30 : vector<1x384xf32> to vector<8x384xf32>
    %40 = arith.mulf %38, %39 : vector<8x384xf32>
    %41 = arith.mulf %40, %33 : vector<8x384xf32>
    %42 = arith.addf %36, %41 : vector<8x384xf32>
    %c0_32 = arith.constant 0 : index
    %c0_33 = arith.constant 0 : index
    %43 = vector.load %arg6[%c0_32, %c0_33] : memref<8x384xf32, #tpu.memory_space<vmem>>, vector<8x384xf32>
    tpu.vector_store %arg6[%c0_32, %c0_33], %42 {strides = array<i32>} : memref<8x384xf32, #tpu.memory_space<vmem>>, vector<8x384xf32>,
    %c5 = arith.constant 5 : index
    %c0_34 = arith.constant 0 : index
    %44 = vector.load %arg2[%c5, %c0_34] : memref<11x384xf32, #tpu.memory_space<vmem>>, vector<1x384xf32>
    %c6 = arith.constant 6 : index
    %c0_35 = arith.constant 0 : index
    %45 = vector.load %arg2[%c6, %c0_35] : memref<11x384xf32, #tpu.memory_space<vmem>>, vector<1x384xf32>
    %c7 = arith.constant 7 : index
    %c0_36 = arith.constant 0 : index
    %46 = vector.load %arg2[%c7, %c0_36] : memref<11x384xf32, #tpu.memory_space<vmem>>, vector<1x384xf32>
    %c0_37 = arith.constant 0 : index
    %c0_38 = arith.constant 0 : index
    %47 = vector.load %arg5[%c0_37, %c0_38] : memref<8x384xf32, #tpu.memory_space<vmem>>, vector<8x384xf32>
    %c0_39 = arith.constant 0 : index
    %c0_40 = arith.constant 0 : index
    %48 = vector.load %arg6[%c0_39, %c0_40] : memref<8x384xf32, #tpu.memory_space<vmem>>, vector<8x384xf32>
    %c352_i32_41 = arith.constant 352 : i32
    %49 = tpu.dynamic_rotate %48 by %c352_i32_41 dim 1 : vector<8x384xf32>, i32 -> vector<8x384xf32>
    %50 = vector.broadcast %44 : vector<1x384xf32> to vector<8x384xf32>
    %51 = arith.mulf %47, %50 : vector<8x384xf32>
    %52 = arith.mulf %51, %48 : vector<8x384xf32>
    %53 = vector.broadcast %45 : vector<1x384xf32> to vector<8x384xf32>
    %54 = arith.subf %53, %47 : vector<8x384xf32>
    %55 = vector.broadcast %46 : vector<1x384xf32> to vector<8x384xf32>
    %56 = arith.mulf %54, %55 : vector<8x384xf32>
    %57 = arith.mulf %56, %49 : vector<8x384xf32>
    %58 = arith.addf %52, %57 : vector<8x384xf32>
    %c0_42 = arith.constant 0 : index
    %c0_43 = arith.constant 0 : index
    %59 = vector.load %arg6[%c0_42, %c0_43] : memref<8x384xf32, #tpu.memory_space<vmem>>, vector<8x384xf32>
    tpu.vector_store %arg6[%c0_42, %c0_43], %58 {strides = array<i32>} : memref<8x384xf32, #tpu.memory_space<vmem>>, vector<8x384xf32>,
    %c8 = arith.constant 8 : index
    %c0_44 = arith.constant 0 : index
    %60 = vector.load %arg2[%c8, %c0_44] : memref<11x384xf32, #tpu.memory_space<vmem>>, vector<1x384xf32>
    %c9 = arith.constant 9 : index
    %c0_45 = arith.constant 0 : index
    %61 = vector.load %arg2[%c9, %c0_45] : memref<11x384xf32, #tpu.memory_space<vmem>>, vector<1x384xf32>
    %c10 = arith.constant 10 : index
    %c0_46 = arith.constant 0 : index
    %62 = vector.load %arg2[%c10, %c0_46] : memref<11x384xf32, #tpu.memory_space<vmem>>, vector<1x384xf32>
    %c0_47 = arith.constant 0 : index
    %c0_48 = arith.constant 0 : index
    %63 = vector.load %arg5[%c0_47, %c0_48] : memref<8x384xf32, #tpu.memory_space<vmem>>, vector<8x384xf32>
    %c0_49 = arith.constant 0 : index
    %c0_50 = arith.constant 0 : index
    %64 = vector.load %arg6[%c0_49, %c0_50] : memref<8x384xf32, #tpu.memory_space<vmem>>, vector<8x384xf32>
    %c352_i32_51 = arith.constant 352 : i32
    %65 = tpu.dynamic_rotate %64 by %c352_i32_51 dim 1 : vector<8x384xf32>, i32 -> vector<8x384xf32>
    %66 = vector.broadcast %60 : vector<1x384xf32> to vector<8x384xf32>
    %67 = arith.mulf %63, %66 : vector<8x384xf32>
    %68 = arith.mulf %67, %64 : vector<8x384xf32>
    %69 = vector.broadcast %61 : vector<1x384xf32> to vector<8x384xf32>
    %70 = arith.subf %69, %63 : vector<8x384xf32>
    %71 = vector.broadcast %62 : vector<1x384xf32> to vector<8x384xf32>
    %72 = arith.mulf %70, %71 : vector<8x384xf32>
    %73 = arith.mulf %72, %65 : vector<8x384xf32>
    %74 = arith.addf %68, %73 : vector<8x384xf32>
    %c0_52 = arith.constant 0 : index
    %c0_53 = arith.constant 0 : index
    %75 = vector.load %arg6[%c0_52, %c0_53] : memref<8x384xf32, #tpu.memory_space<vmem>>, vector<8x384xf32>
    tpu.vector_store %arg6[%c0_52, %c0_53], %74 {strides = array<i32>} : memref<8x384xf32, #tpu.memory_space<vmem>>, vector<8x384xf32>,
    %76 = arith.negf %0 : vector<8x32xf32>
    %77 = math.exp %76 : vector<8x32xf32>
    %cst_54 = arith.constant 1.000000e+00 : f32
    %78 = vector.broadcast %cst_54 : f32 to vector<8x32xf32>
    %79 = arith.addf %78, %77 : vector<8x32xf32>
    %80 = arith.divf %78, %79 : vector<8x32xf32>
    %81 = arith.mulf %0, %80 : vector<8x32xf32>
    %c0_55 = arith.constant 0 : index
    %c352_56 = arith.constant 352 : index
    %82 = vector.load %arg6[%c0_55, %c352_56] : memref<8x384xf32, #tpu.memory_space<vmem>>, vector<8x32xf32>
    tpu.vector_store %arg6[%c0_55, %c352_56], %81 {strides = array<i32>} : memref<8x384xf32, #tpu.memory_space<vmem>>, vector<8x32xf32>,
    %c0_57 = arith.constant 0 : index
    %c0_58 = arith.constant 0 : index
    %83 = vector.load %arg6[%c0_57, %c0_58] : memref<8x384xf32, #tpu.memory_space<vmem>>, vector<8x384xf32>
    %c0_59 = arith.constant 0 : index
    %c0_60 = arith.constant 0 : index
    %84 = vector.load %arg3[%c0_59, %c0_60] : memref<384x128xf32, #tpu.memory_space<vmem>>, vector<384x128xf32>
    %cst_61 = arith.constant dense<0.000000e+00> : vector<8x128xf32>
    %85 = tpu.matmul %83, %84, %cst_61 {dimension_numbers = #tpu.dot_dimension_numbers<[1], [0], [0], [1], [0, 0, 1, 1], [], []>} : vector<8x384xf32>, vector<384x128xf32>, vector<8x128xf32> -> vector<8x128xf32>
    %c0_62 = arith.constant 0 : index
    %c0_63 = arith.constant 0 : index
    %86 = vector.load %arg4[%c0_62, %c0_63] : memref<8x128xf32, #tpu.memory_space<vmem>>, vector<8x128xf32>
    tpu.vector_store %arg4[%c0_62, %c0_63], %85 {strides = array<i32>} : memref<8x128xf32, #tpu.memory_space<vmem>>, vector<8x128xf32>,
    return
  }
  func.func @transform_0(%arg0: i32) -> (i32, i32) {
    %c0_i32 = arith.constant 0 : i32
    %c0_i32_0 = arith.constant 0 : i32
    return %arg0, %c0_i32 : i32, i32
  }
  func.func @transform_1(%arg0: i32) -> (i32, i32) {
    %c0_i32 = arith.constant 0 : i32
    %c0_i32_0 = arith.constant 0 : i32
    %c0_i32_1 = arith.constant 0 : i32
    return %c0_i32, %c0_i32_0 : i32, i32
  }
  func.func @transform_2(%arg0: i32) -> (i32, i32) {
    %c0_i32 = arith.constant 0 : i32
    %c0_i32_0 = arith.constant 0 : i32
    %c0_i32_1 = arith.constant 0 : i32
    return %c0_i32, %c0_i32_0 : i32, i32
  }
  func.func @transform_3(%arg0: i32) -> (i32, i32) {
    %c0_i32 = arith.constant 0 : i32
    %c0_i32_0 = arith.constant 0 : i32
    return %arg0, %c0_i32 : i32, i32
  }
}

</mosaic_0001>

<llo_original>
// kernel: tpu_custom_call.1
$region0: #{tpu_custom_call.1}
  #allocation0 [shape = 'u32[]', space=smem, size = 0x4, offset = 0x4, fixed_abs, tag = 'smem constant byte address 0x4 - core index']
  #allocation1 [shape = 'u32[144,128]{1,0:T(1,128)}', space=vmem, size = 0x12000, scoped, tag = 'internal scratch']
  #allocation2 [shape = 'f32[8,384]{1,0:T(8,128)}', space=vmem, size = 0x3000, scoped, tag = 'scratch operand']
  #allocation3 [shape = 'f32[8,384]{1,0:T(8,128)}', space=vmem, size = 0x3000, scoped, tag = 'scratch operand']
  %s0 = inlined_call_operand.hbm [shape: f32[16,32], index: 0, kind: input, shape index: {}]
  %s1 = inlined_call_operand.hbm [shape: f32[11,384], index: 1, kind: input, shape index: {}]
  %s2 = inlined_call_operand.hbm [shape: f32[384,128], index: 2, kind: input, shape index: {}]
  %s3 = inlined_call_operand.hbm [shape: f32[16,128], index: 3, kind: output, shape index: {}]
  %s4 = sld [smem:[#allocation0]]
  $region57: #{tpu_custom_call.1} parent=0
    _
  %s6 = ssub.s32 1, %s4
  %s7 = scalar_select 0, %s6, %s4
  $region1: #{tpu_custom_call.1} parent=0
    #allocation4 [shape = 'u8[8192]{0}', space=vmem, size = 0x2000, scoped, tag = 'input window, operand 0']
    #allocation5 [shape = 's32[2]{0}', space=sflag, size = 0x8, scoped, tag = 'scoped memory for tpu_custom_call.1']
    #allocation6 [shape = 's32[2]{0}', space=sflag, size = 0x8, scoped, tag = 'scoped memory for tpu_custom_call.1']
    #allocation7 [shape = 'u8[24576]{0}', space=vmem, size = 0x6000, scoped, tag = 'input window, operand 1, single buffered']
    #allocation8 [shape = 's32[1]{0}', space=sflag, size = 0x4, scoped, tag = 'scoped memory for tpu_custom_call.1']
    #allocation9 [shape = 'u8[196608]{0}', space=vmem, size = 0x30000, scoped, tag = 'input window, operand 2, single buffered']
    #allocation10 [shape = 'u8[8192]{0}', space=vmem, size = 0x2000, scoped, tag = 'output window, operand 0']
    %8 = vsyncpa [#allocation5], 0
    %s9 = scalar_lea.sflag [#allocation5], 1
    %10 = vsyncpa %s9, 0
    %11 = vsyncpa [#allocation8], 0
    %12 = vsyncpa [#allocation6], 0
    %s13 = scalar_lea.sflag [#allocation6], 1
    %14 = vsyncpa %s13, 0
    loop: start=0, step=1, limit=4
    $region2: #{tpu_custom_call.1} parent=1 // loop_pre_header
      _
    $region3: #{tpu_custom_call.1} parent=1 // loop_header
      %s16 = sphi 0, %s20
      %p17 = scmp.ge.s32.totalorder %s16, 4
      %s26 = sphi 0, %s28
      %s29 = sphi 0, %s26
      %s30 = sphi 0, %s29
      %s46 = sphi 0, %s30
      %s50 = sphi 0, %s50
      %s52 = sphi 0, %s50
      %s53 = sphi 0, %s52
      %s67 = sphi 0, %s53
      %s71 = sphi 0, %s71
      %s73 = sphi 0, %s71
      %s74 = sphi 0, %s73
      %s88 = sphi 0, %s74
      %s94 = sphi 0, %s96
      %s97 = sphi 0, %s94
      %s98 = sphi 0, %s97
      %s114 = sphi 0, %s98
    $region4: #{tpu_custom_call.1} parent=1 // loop_header_branch
      %19 = sbr.rel (%p17) target = $region8
    $region5: #{tpu_custom_call.1} parent=1 // loop_body
      %s21 = ssub.s32 %s16, 1
      %s22 = ssub.s32 %s16, 2
      %s23 = sadd.s32 %s16, 1
      %s24 = ssub.s32 %s16, %s23
      %p25 = scmp.eq.s32.totalorder %s24, 0
      %s27 = sadd.s32 %s26, 1
      %s28 = scalar_select %p25, %s26, %s27
      %p31 = pneg %p25
      %p32 = scmp.eq.s32.totalorder %s16, 1
      %p33 = por %p31, %p32
      %p34 = scmp.ne.s32.totalorder %s26, %s29
      %p35 = scmp.eq.s32.totalorder %s16, 0
      %p36 = por %p34, %p35
      %p37 = scmp.ne.s32.totalorder %s26, %s29
      %p38 = scmp.eq.s32.totalorder %s21, 1
      %p39 = por %p37, %p38
      %p40 = scmp.ne.s32.totalorder %s29, %s30
      %p41 = scmp.eq.s32.totalorder %s21, 0
      %p42 = por %p40, %p41
      %p43 = scmp.ne.s32.totalorder %s29, %s30
      %p44 = scmp.eq.s32.totalorder %s22, 1
      %p45 = por %p43, %p44
      %p47 = scmp.ne.s32.totalorder %s30, %s46
      %p48 = scmp.eq.s32.totalorder %s22, 0
      %p49 = por %p47, %p48
      %s51 = sadd.s32 %s50, 1
      %p54 = scmp.eq.s32.totalorder %s16, 1
      %p55 = scmp.ne.s32.totalorder %s50, %s52
      %p56 = scmp.eq.s32.totalorder %s16, 0
      %p57 = por %p55, %p56
      %p58 = scmp.ne.s32.totalorder %s50, %s52
      %p59 = scmp.eq.s32.totalorder %s21, 1
      %p60 = por %p58, %p59
      %p61 = scmp.ne.s32.totalorder %s52, %s53
      %p62 = scmp.eq.s32.totalorder %s21, 0
      %p63 = por %p61, %p62
      %p64 = scmp.ne.s32.totalorder %s52, %s53
      %p65 = scmp.eq.s32.totalorder %s22, 1
      %p66 = por %p64, %p65
      %p68 = scmp.ne.s32.totalorder %s53, %s67
      %p69 = scmp.eq.s32.totalorder %s22, 0
      %p70 = por %p68, %p69
      %s72 = sadd.s32 %s71, 1
      %p75 = scmp.eq.s32.totalorder %s16, 1
      %p76 = scmp.ne.s32.totalorder %s71, %s73
      %p77 = scmp.eq.s32.totalorder %s16, 0
      %p78 = por %p76, %p77
      %p79 = scmp.ne.s32.totalorder %s71, %s73
      %p80 = scmp.eq.s32.totalorder %s21, 1
      %p81 = por %p79, %p80
      %p82 = scmp.ne.s32.totalorder %s73, %s74
      %p83 = scmp.eq.s32.totalorder %s21, 0
      %p84 = por %p82, %p83
      %p85 = scmp.ne.s32.totalorder %s73, %s74
      %p86 = scmp.eq.s32.totalorder %s22, 1
      %p87 = por %p85, %p86
      %p89 = scmp.ne.s32.totalorder %s74, %s88
      %p90 = scmp.eq.s32.totalorder %s22, 0
      %p91 = por %p89, %p90
      %s92 = ssub.s32 %s16, %s23
      %p93 = scmp.eq.s32.totalorder %s92, 0
      %s95 = sadd.s32 %s94, 1
      %s96 = scalar_select %p93, %s94, %s95
      %p99 = pneg %p93
      %p100 = scmp.eq.s32.totalorder %s16, 1
      %p101 = por %p99, %p100
      %p102 = scmp.ne.s32.totalorder %s94, %s97
      %p103 = scmp.eq.s32.totalorder %s16, 0
      %p104 = por %p102, %p103
      %p105 = scmp.ne.s32.totalorder %s94, %s97
      %p106 = scmp.eq.s32.totalorder %s21, 1
      %p107 = por %p105, %p106
      %p108 = scmp.ne.s32.totalorder %s97, %s98
      %p109 = scmp.eq.s32.totalorder %s21, 0
      %p110 = por %p108, %p109
      %p111 = scmp.ne.s32.totalorder %s97, %s98
      %p112 = scmp.eq.s32.totalorder %s22, 1
      %p113 = por %p111, %p112
      %p115 = scmp.ne.s32.totalorder %s98, %s114
      %p116 = scmp.eq.s32.totalorder %s22, 0
      %p117 = por %p115, %p116
      %p118 = scmp.le.s32.totalorder 1, %s16
      %p119 = scmp.lt.s32.totalorder %s16, 3
      %p120 = pnand %p118, %p119
      %p121 = pneg %p120
      // Predicated region
      $region9: #{tpu_custom_call.1} parent=5 // pred_check
        _
      $region10: #{tpu_custom_call.1} parent=5 // pred_check_branch
        %123 = sbr.rel (%p120) target = $region12
      $region11: #{tpu_custom_call.1} parent=5 // pred_region
        %s124 = ssub.s32 %s16, 1
        // Predicated region
        $region13: #{tpu_custom_call.1} parent=11 // pred_check
          %p125 = pneg %p63
        $region14: #{tpu_custom_call.1} parent=11 // pred_check_branch
          %127 = sbr.rel (%p125) target = $region16
        $region15: #{tpu_custom_call.1} parent=11 // pred_region
          %s129 = ssub.s32 768, 768
          %130 = vsyncadd [#allocation8], %s129
          %s131 = sshll.u32 [#allocation7], 4
          %s132 = int_to_ptr.vmem [resolvable:$true] %s131
          %137 = dma.hbm_to_vmem [thread:$0]  %s1, 768, %s132, [#allocation8], 384, 384, 24
        $region16: #{tpu_custom_call.1} parent=11 // pred_fallthru
          _
        // Predicated region
        $region17: #{tpu_custom_call.1} parent=11 // pred_check
          %p138 = pneg %p84
        $region18: #{tpu_custom_call.1} parent=11 // pred_check_branch
          %140 = sbr.rel (%p138) target = $region20
        $region19: #{tpu_custom_call.1} parent=11 // pred_region
          %s142 = ssub.s32 6144, 6144
          %143 = vsyncadd [#allocation8], %s142
          %s144 = sshll.u32 [#allocation9], 4
          %s145 = int_to_ptr.vmem [resolvable:$true] %s144
          %150 = dma.hbm_to_vmem [thread:$0]  %s2, 6144, %s145, [#allocation8], 128, 128, 8
        $region20: #{tpu_custom_call.1} parent=11 // pred_fallthru
          _
      $region12: #{tpu_custom_call.1} parent=5 // pred_fallthru
        _
      %p151 = scmp.lt.s32.totalorder %s16, 2
      // Predicated region
      $region21: #{tpu_custom_call.1} parent=5 // pred_check
        %p152 = pneg %p151
      $region22: #{tpu_custom_call.1} parent=5 // pred_check_branch
        %154 = sbr.rel (%p152) target = $region24
      $region23: #{tpu_custom_call.1} parent=5 // pred_region
        // Predicated region
        $region25: #{tpu_custom_call.1} parent=23 // pred_check
          %p155 = pneg %p36
        $region26: #{tpu_custom_call.1} parent=23 // pred_check_branch
          %157 = sbr.rel (%p155) target = $region28
        $region27: #{tpu_custom_call.1} parent=23 // pred_region
          %s158 = sand.u32 %s26, 1
          %s159 = scalar_lea.sflag [#allocation5], %s158
          %s160 = sand.u32 %s26, 1
          %s161 = smul.addr %s160, 8
          %s162 = scalar_lea.vmem [#allocation4], %s161
          %s164 = ssub.s32 128, 128
          %165 = vsyncadd %s159, %s164
          %s166 = smul.addr %s16, 128
          %s167 = scalar_lea.hbm %s0, %s166
          %s169 = sshll.u32 %s162, 4
          %s170 = int_to_ptr.vmem [resolvable:$true] %s169
          %172 = dma.hbm_to_vmem [thread:$0]  %s167, 128, %s170, %s159
        $region28: #{tpu_custom_call.1} parent=23 // pred_fallthru
          _
      $region24: #{tpu_custom_call.1} parent=5 // pred_fallthru
        _
      %p173 = scmp.le.s32.totalorder 1, %s16
      %p174 = scmp.lt.s32.totalorder %s16, 3
      %p175 = pnand %p173, %p174
      %p176 = pneg %p175
      // Predicated region
      $region29: #{tpu_custom_call.1} parent=5 // pred_check
        _
      $region30: #{tpu_custom_call.1} parent=5 // pred_check_branch
        %178 = sbr.rel (%p175) target = $region32
      $region31: #{tpu_custom_call.1} parent=5 // pred_region
        %s179 = ssub.s32 %s16, 1
        %s180 = sand.u32 %s29, 1
        %s181 = scalar_lea.sflag [#allocation5], %s180
        %s182 = sand.u32 %s29, 1
        %s183 = smul.addr %s182, 8
        %s184 = scalar_lea.vmem [#allocation4], %s183
        // Predicated region
        $region33: #{tpu_custom_call.1} parent=31 // pred_check
          %p185 = pneg %p42
        $region34: #{tpu_custom_call.1} parent=31 // pred_check_branch
          %187 = sbr.rel (%p185) target = $region36
        $region35: #{tpu_custom_call.1} parent=31 // pred_region
          %188 = dma.done %s181, 128
        $region36: #{tpu_custom_call.1} parent=31 // pred_fallthru
          _
        // Predicated region
        $region37: #{tpu_custom_call.1} parent=31 // pred_check
          %p189 = pneg %p63
        $region38: #{tpu_custom_call.1} parent=31 // pred_check_branch
          %191 = sbr.rel (%p189) target = $region40
        $region39: #{tpu_custom_call.1} parent=31 // pred_region
          %192 = dma.done [#allocation8], 768
        $region40: #{tpu_custom_call.1} parent=31 // pred_fallthru
          _
        // Predicated region
        $region41: #{tpu_custom_call.1} parent=31 // pred_check
          %p193 = pneg %p84
        $region42: #{tpu_custom_call.1} parent=31 // pred_check_branch
          %195 = sbr.rel (%p193) target = $region44
        $region43: #{tpu_custom_call.1} parent=31 // pred_region
          %196 = dma.done [#allocation8], 6144
        $region44: #{tpu_custom_call.1} parent=31 // pred_fallthru
          _
        %s197 = sand.u32 %s29, 1
        %s198 = scalar_lea.sflag [#allocation5], %s197
        %s199 = sand.u32 %s29, 1
        %s200 = smul.addr %s199, 8
        %s201 = scalar_lea.vmem [#allocation4], %s200
        %p202 = pneg %p42
        %p203 = pneg %p39
        %p204 = pneg %p63
        %p205 = pneg %p60
        %p206 = pneg %p84
        %p207 = pneg %p81
        %p208 = pneg %p110
        %p209 = pneg %p107
        %s210 = sand.u32 %s97, 1
        %s211 = scalar_lea.sflag [#allocation6], %s210
        %s212 = sand.u32 %s97, 1
        %s213 = smul.addr %s212, 8
        %s214 = scalar_lea.vmem [#allocation10], %s213
        %v215 = vld [vmem:[%s184] sm:$0xff]
        %vm216 = vcmask 261120
        %217 = vst.msk [vmem:[#allocation2] sm:$0xff] %vm216, %v215
        %219 = vrot.lane.b32.xlu0 %v215, 32
        %v220 = vpop.permute.xlu0 %219
        %vm222 = vcmask 523520
        %223 = vst.msk [vmem:[#allocation2] sm:$0xff] %vm222, %v220
        %224 = vrot.lane.b32.xlu0 %v215, 64
        %v225 = vpop.permute.xlu0 %224
        %vm227 = vcmask 785920
        %228 = vst.msk [vmem:[#allocation2] sm:$0xff] %vm227, %v225
        %229 = vrot.lane.b32.xlu0 %v215, 96
        %v230 = vpop.permute.xlu0 %229
        %vm232 = vcmask 1048320
        %233 = vst.msk [vmem:[#allocation2] sm:$0xff] %vm232, %v230
        %234 = vst.msk [vmem:[#allocation2 + $0x8] sm:$0xff] %vm216, %v215
        %235 = vst.msk [vmem:[#allocation2 + $0x8] sm:$0xff] %vm222, %v220
        %236 = vst.msk [vmem:[#allocation2 + $0x8] sm:$0xff] %vm227, %v225
        %237 = vst.msk [vmem:[#allocation2 + $0x8] sm:$0xff] %vm232, %v230
        %238 = vst.msk [vmem:[#allocation2 + $0x10] sm:$0xff] %vm216, %v215
        %239 = vst.msk [vmem:[#allocation2 + $0x10] sm:$0xff] %vm222, %v220
        %240 = vst.msk [vmem:[#allocation2 + $0x10] sm:$0xff] %vm227, %v225
        %241 = vst.msk [vmem:[#allocation2 + $0x10] sm:$0xff] %vm232, %v230
        %v242 = vld [vmem:[#allocation2] sm:$0xff]
        %v243 = vld [vmem:[#allocation2 + $0x8] sm:$0xff]
        %v244 = vld [vmem:[#allocation2 + $0x10] sm:$0xff]
        %v245 = vld [vmem:[#allocation7] ss:$8 sm:$0x7]
        %v247 = vlaneseq
        %v248 = vshrl.u32 %v247, 7
        %v249 = vsub.s32 0, %v248
        %v250 = vrot.slane %v245, %v249
        %v251 = vlaneseq
        %v252 = vshrl.u32 %v251, 7
        %v253 = vsub.s32 1, %v252
        %v254 = vrot.slane %v245, %v253
        %v255 = vlaneseq
        %v256 = vshrl.u32 %v255, 7
        %v257 = vsub.s32 2, %v256
        %v258 = vrot.slane %v245, %v257
        %v262 = vsub.f32 %v242, %v250
        %v263 = vsub.f32 %v243, %v254
        %v264 = vsub.f32 %v244, %v258
        %265 = vst [vmem:[#allocation2] sm:$0xff] %v262
        %266 = vst [vmem:[#allocation2 + $0x8] sm:$0xff] %v263
        %267 = vst [vmem:[#allocation2 + $0x10] sm:$0xff] %v264
        %v268 = vld [vmem:[#allocation2] sm:$0xff]
        %v269 = vld [vmem:[#allocation2 + $0x8] sm:$0xff]
        %v270 = vld [vmem:[#allocation2 + $0x10] sm:$0xff]
        %vm271 = vcmp.ge.f32.partialorder %v268, 0.0
        %vm272 = vcmp.ge.f32.partialorder %v269, 0.0
        %vm273 = vcmp.ge.f32.partialorder %v270, 0.0
        %s274 = scalar_lea.vmem [#allocation7], 1
        %v275 = vld [vmem:[%s274] ss:$8 sm:$0x7]
        %v277 = vlaneseq
        %v278 = vshrl.u32 %v277, 7
        %v279 = vsub.s32 0, %v278
        %v280 = vrot.slane %v275, %v279
        %v281 = vlaneseq
        %v282 = vshrl.u32 %v281, 7
        %v283 = vsub.s32 1, %v282
        %v284 = vrot.slane %v275, %v283
        %v285 = vlaneseq
        %v286 = vshrl.u32 %v285, 7
        %v287 = vsub.s32 2, %v286
        %v288 = vrot.slane %v275, %v287
        %vm292 = vcmp.lt.f32.partialorder %v268, %v280
        %vm293 = vcmp.lt.f32.partialorder %v269, %v284
        %vm294 = vcmp.lt.f32.partialorder %v270, %v288
        %vm295 = vmand %vm271, %vm292
        %vm296 = vmand %vm272, %vm293
        %vm297 = vmand %vm273, %vm294
        %v298 = vsel %vm295, 1, 0
        %v299 = vsel %vm296, 1, 0
        %v300 = vsel %vm297, 1, 0
        %v301 = vcvt.s32.f32 %v298
        %v302 = vcvt.s32.f32 %v299
        %v303 = vcvt.s32.f32 %v300
        %304 = vst [vmem:[#allocation3] sm:$0xff] %v301
        %305 = vst [vmem:[#allocation3 + $0x8] sm:$0xff] %v302
        %306 = vst [vmem:[#allocation3 + $0x10] sm:$0xff] %v303
        %s307 = scalar_lea.vmem [#allocation7], 2
        %v308 = vld [vmem:[%s307] ss:$8 sm:$0x7]
        %s309 = scalar_lea.vmem [#allocation7], 3
        %v310 = vld [vmem:[%s309] ss:$8 sm:$0x7]
        %s311 = scalar_lea.vmem [#allocation7], 4
        %v312 = vld [vmem:[%s311] ss:$8 sm:$0x7]
        %v313 = vld [vmem:[#allocation2] sm:$0xff]
        %v314 = vld [vmem:[#allocation2 + $0x8] sm:$0xff]
        %v315 = vld [vmem:[#allocation2 + $0x10] sm:$0xff]
        %v316 = vld [vmem:[#allocation3] sm:$0xff]
        %v317 = vld [vmem:[#allocation3 + $0x8] sm:$0xff]
        %v318 = vld [vmem:[#allocation3 + $0x10] sm:$0xff]
        %319 = vrot.lane.b32.xlu0 %v316, 96
        %v320 = vpop.permute.xlu0 %319
        %321 = vrot.lane.b32.xlu0 %v317, 96
        %v322 = vpop.permute.xlu0 %321
        %323 = vrot.lane.b32.xlu0 %v318, 96
        %v324 = vpop.permute.xlu0 %323
        %v325 = vlaneseq
        %v326 = vand.u32 %v325, 127
        %vm327 = vcmp.lt.s32.totalorder %v326, 96
        %v328 = vsel %vm327, %v322, %v324
        %v329 = vsel %vm327, %v320, %v322
        %v330 = vsel %vm327, %v324, %v320
        %v332 = vlaneseq
        %v333 = vshrl.u32 %v332, 7
        %v334 = vsub.s32 0, %v333
        %v335 = vrot.slane %v308, %v334
        %v336 = vlaneseq
        %v337 = vshrl.u32 %v336, 7
        %v338 = vsub.s32 1, %v337
        %v339 = vrot.slane %v308, %v338
        %v340 = vlaneseq
        %v341 = vshrl.u32 %v340, 7
        %v342 = vsub.s32 2, %v341
        %v343 = vrot.slane %v308, %v342
        %v347 = vmul.f32 %v313, %v335
        %v348 = vmul.f32 %v314, %v339
        %v349 = vmul.f32 %v315, %v343
        %v350 = vmul.f32 %v347, %v316
        %v351 = vmul.f32 %v348, %v317
        %v352 = vmul.f32 %v349, %v318
        %v354 = vlaneseq
        %v355 = vshrl.u32 %v354, 7
        %v356 = vsub.s32 0, %v355
        %v357 = vrot.slane %v310, %v356
        %v358 = vlaneseq
        %v359 = vshrl.u32 %v358, 7
        %v360 = vsub.s32 1, %v359
        %v361 = vrot.slane %v310, %v360
        %v362 = vlaneseq
        %v363 = vshrl.u32 %v362, 7
        %v364 = vsub.s32 2, %v363
        %v365 = vrot.slane %v310, %v364
        %v369 = vsub.f32 %v357, %v313
        %v370 = vsub.f32 %v361, %v314
        %v371 = vsub.f32 %v365, %v315
        %v373 = vlaneseq
        %v374 = vshrl.u32 %v373, 7
        %v375 = vsub.s32 0, %v374
        %v376 = vrot.slane %v312, %v375
        %v377 = vlaneseq
        %v378 = vshrl.u32 %v377, 7
        %v379 = vsub.s32 1, %v378
        %v380 = vrot.slane %v312, %v379
        %v381 = vlaneseq
        %v382 = vshrl.u32 %v381, 7
        %v383 = vsub.s32 2, %v382
        %v384 = vrot.slane %v312, %v383
        %v388 = vmul.f32 %v369, %v376
        %v389 = vmul.f32 %v370, %v380
        %v390 = vmul.f32 %v371, %v384
        %v391 = vmul.f32 %v388, %v329
        %v392 = vmul.f32 %v389, %v328
        %v393 = vmul.f32 %v390, %v330
        %v394 = vadd.f32 %v350, %v391
        %v395 = vadd.f32 %v351, %v392
        %v396 = vadd.f32 %v352, %v393
        %397 = vst [vmem:[#allocation3] sm:$0xff] %v394
        %398 = vst [vmem:[#allocation3 + $0x8] sm:$0xff] %v395
        %399 = vst [vmem:[#allocation3 + $0x10] sm:$0xff] %v396
        %s400 = scalar_lea.vmem [#allocation7], 5
        %v401 = vld [vmem:[%s400] ss:$8 sm:$0x7]
        %s402 = scalar_lea.vmem [#allocation7], 6
        %v403 = vld [vmem:[%s402] ss:$8 sm:$0x7]
        %s404 = scalar_lea.vmem [#allocation7], 7
        %v405 = vld [vmem:[%s404] ss:$8 sm:$0x7]
        %v406 = vld [vmem:[#allocation2] sm:$0xff]
        %v407 = vld [vmem:[#allocation2 + $0x8] sm:$0xff]
        %v408 = vld [vmem:[#allocation2 + $0x10] sm:$0xff]
        %v409 = vld [vmem:[#allocation3] sm:$0xff]
        %v410 = vld [vmem:[#allocation3 + $0x8] sm:$0xff]
        %v411 = vld [vmem:[#allocation3 + $0x10] sm:$0xff]
        %412 = vrot.lane.b32.xlu0 %v409, 96
        %v413 = vpop.permute.xlu0 %412
        %414 = vrot.lane.b32.xlu0 %v410, 96
        %v415 = vpop.permute.xlu0 %414
        %416 = vrot.lane.b32.xlu0 %v411, 96
        %v417 = vpop.permute.xlu0 %416
        %v418 = vsel %vm327, %v415, %v417
        %v419 = vsel %vm327, %v413, %v415
        %v420 = vsel %vm327, %v417, %v413
        %v422 = vlaneseq
        %v423 = vshrl.u32 %v422, 7
        %v424 = vsub.s32 0, %v423
        %v425 = vrot.slane %v401, %v424
        %v426 = vlaneseq
        %v427 = vshrl.u32 %v426, 7
        %v428 = vsub.s32 1, %v427
        %v429 = vrot.slane %v401, %v428
        %v430 = vlaneseq
        %v431 = vshrl.u32 %v430, 7
        %v432 = vsub.s32 2, %v431
        %v433 = vrot.slane %v401, %v432
        %v437 = vmul.f32 %v406, %v425
        %v438 = vmul.f32 %v407, %v429
        %v439 = vmul.f32 %v408, %v433
        %v440 = vmul.f32 %v437, %v409
        %v441 = vmul.f32 %v438, %v410
        %v442 = vmul.f32 %v439, %v411
        %v444 = vlaneseq
        %v445 = vshrl.u32 %v444, 7
        %v446 = vsub.s32 0, %v445
        %v447 = vrot.slane %v403, %v446
        %v448 = vlaneseq
        %v449 = vshrl.u32 %v448, 7
        %v450 = vsub.s32 1, %v449
        %v451 = vrot.slane %v403, %v450
        %v452 = vlaneseq
        %v453 = vshrl.u32 %v452, 7
        %v454 = vsub.s32 2, %v453
        %v455 = vrot.slane %v403, %v454
        %v459 = vsub.f32 %v447, %v406
        %v460 = vsub.f32 %v451, %v407
        %v461 = vsub.f32 %v455, %v408
        %v463 = vlaneseq
        %v464 = vshrl.u32 %v463, 7
        %v465 = vsub.s32 0, %v464
        %v466 = vrot.slane %v405, %v465
        %v467 = vlaneseq
        %v468 = vshrl.u32 %v467, 7
        %v469 = vsub.s32 1, %v468
        %v470 = vrot.slane %v405, %v469
        %v471 = vlaneseq
        %v472 = vshrl.u32 %v471, 7
        %v473 = vsub.s32 2, %v472
        %v474 = vrot.slane %v405, %v473
        %v478 = vmul.f32 %v459, %v466
        %v479 = vmul.f32 %v460, %v470
        %v480 = vmul.f32 %v461, %v474
        %v481 = vmul.f32 %v478, %v419
        %v482 = vmul.f32 %v479, %v418
        %v483 = vmul.f32 %v480, %v420
        %v484 = vadd.f32 %v440, %v481
        %v485 = vadd.f32 %v441, %v482
        %v486 = vadd.f32 %v442, %v483
        %487 = vst [vmem:[#allocation3] sm:$0xff] %v484
        %488 = vst [vmem:[#allocation3 + $0x8] sm:$0xff] %v485
        %489 = vst [vmem:[#allocation3 + $0x10] sm:$0xff] %v486
        %s490 = scalar_lea.vmem [#allocation7], 24
        %v491 = vld [vmem:[%s490] ss:$8 sm:$0x7]
        %s492 = scalar_lea.vmem [#allocation7], 25
        %v493 = vld [vmem:[%s492] ss:$8 sm:$0x7]
        %s494 = scalar_lea.vmem [#allocation7], 26
        %v495 = vld [vmem:[%s494] ss:$8 sm:$0x7]
        %v496 = vld [vmem:[#allocation2] sm:$0xff]
        %v497 = vld [vmem:[#allocation2 + $0x8] sm:$0xff]
        %v498 = vld [vmem:[#allocation2 + $0x10] sm:$0xff]
        %v499 = vld [vmem:[#allocation3] sm:$0xff]
        %v500 = vld [vmem:[#allocation3 + $0x8] sm:$0xff]
        %v501 = vld [vmem:[#allocation3 + $0x10] sm:$0xff]
        %502 = vrot.lane.b32.xlu0 %v499, 96
        %v503 = vpop.permute.xlu0 %502
        %504 = vrot.lane.b32.xlu0 %v500, 96
        %v505 = vpop.permute.xlu0 %504
        %506 = vrot.lane.b32.xlu0 %v501, 96
        %v507 = vpop.permute.xlu0 %506
        %v508 = vsel %vm327, %v505, %v507
        %v509 = vsel %vm327, %v503, %v505
        %v510 = vsel %vm327, %v507, %v503
        %v512 = vlaneseq
        %v513 = vshrl.u32 %v512, 7
        %v514 = vsub.s32 0, %v513
        %v515 = vrot.slane %v491, %v514
        %v516 = vlaneseq
        %v517 = vshrl.u32 %v516, 7
        %v518 = vsub.s32 1, %v517
        %v519 = vrot.slane %v491, %v518
        %v520 = vlaneseq
        %v521 = vshrl.u32 %v520, 7
        %v522 = vsub.s32 2, %v521
        %v523 = vrot.slane %v491, %v522
        %v527 = vmul.f32 %v496, %v515
        %v528 = vmul.f32 %v497, %v519
        %v529 = vmul.f32 %v498, %v523
        %v530 = vmul.f32 %v527, %v499
        %v531 = vmul.f32 %v528, %v500
        %v532 = vmul.f32 %v529, %v501
        %v534 = vlaneseq
        %v535 = vshrl.u32 %v534, 7
        %v536 = vsub.s32 0, %v535
        %v537 = vrot.slane %v493, %v536
        %v538 = vlaneseq
        %v539 = vshrl.u32 %v538, 7
        %v540 = vsub.s32 1, %v539
        %v541 = vrot.slane %v493, %v540
        %v542 = vlaneseq
        %v543 = vshrl.u32 %v542, 7
        %v544 = vsub.s32 2, %v543
        %v545 = vrot.slane %v493, %v544
        %v549 = vsub.f32 %v537, %v496
        %v550 = vsub.f32 %v541, %v497
        %v551 = vsub.f32 %v545, %v498
        %v553 = vlaneseq
        %v554 = vshrl.u32 %v553, 7
        %v555 = vsub.s32 0, %v554
        %v556 = vrot.slane %v495, %v555
        %v557 = vlaneseq
        %v558 = vshrl.u32 %v557, 7
        %v559 = vsub.s32 1, %v558
        %v560 = vrot.slane %v495, %v559
        %v561 = vlaneseq
        %v562 = vshrl.u32 %v561, 7
        %v563 = vsub.s32 2, %v562
        %v564 = vrot.slane %v495, %v563
        %v568 = vmul.f32 %v549, %v556
        %v569 = vmul.f32 %v550, %v560
        %v570 = vmul.f32 %v551, %v564
        %v571 = vmul.f32 %v568, %v509
        %v572 = vmul.f32 %v569, %v508
        %v573 = vmul.f32 %v570, %v510
        %v574 = vadd.f32 %v530, %v571
        %v575 = vadd.f32 %v531, %v572
        %v576 = vadd.f32 %v532, %v573
        %577 = vst [vmem:[#allocation3] sm:$0xff] %v574
        %578 = vst [vmem:[#allocation3 + $0x8] sm:$0xff] %v575
        %579 = vst [vmem:[#allocation3 + $0x10] sm:$0xff] %v576
        %v580 = vxor.u32 %v215, 2147483648
        %v581 = vmul.f32 %v580, 1.442695
        %v582 = vpow.pop %v581
        %v583 = vadd.f32 %v582, 1.0
        %v584 = vrcp.pop %v583
        %v585 = vmul.f32 1.0, %v584
        %v586 = vmul.f32 %v215, %v585
        %588 = vrot.lane.b32.xlu0 %v586, 96
        %v589 = vpop.permute.xlu0 %588
        %591 = vst.msk [vmem:[#allocation3 + $0x10] sm:$0xff] %vm232, %v589
        %v592 = vld [vmem:[#allocation3] sm:$0xff]
        %v593 = vld [vmem:[#allocation3 + $0x8] sm:$0xff]
        %v594 = vld [vmem:[#allocation3 + $0x10] sm:$0xff]
        %v595 = vld [vmem:[#allocation9] sm:$0xff]
        %v596 = vld [vmem:[#allocation9 + $0x8] sm:$0xff]
        %v597 = vld [vmem:[#allocation9 + $0x10] sm:$0xff]
        %v598 = vld [vmem:[#allocation9 + $0x18] sm:$0xff]
        %v599 = vld [vmem:[#allocation9 + $0x20] sm:$0xff]
        %v600 = vld [vmem:[#allocation9 + $0x28] sm:$0xff]
        %v601 = vld [vmem:[#allocation9 + $0x30] sm:$0xff]
        %v602 = vld [vmem:[#allocation9 + $0x38] sm:$0xff]
        %v603 = vld [vmem:[#allocation9 + $0x40] sm:$0xff]
        %v604 = vld [vmem:[#allocation9 + $0x48] sm:$0xff]
        %v605 = vld [vmem:[#allocation9 + $0x50] sm:$0xff]
        %v606 = vld [vmem:[#allocation9 + $0x58] sm:$0xff]
        %v607 = vld [vmem:[#allocation9 + $0x60] sm:$0xff]
        %v608 = vld [vmem:[#allocation9 + $0x68] sm:$0xff]
        %v609 = vld [vmem:[#allocation9 + $0x70] sm:$0xff]
        %v610 = vld [vmem:[#allocation9 + $0x78] sm:$0xff]
        %v611 = vld [vmem:[#allocation9 + $0x80] sm:$0xff]
        %v612 = vld [vmem:[#allocation9 + $0x88] sm:$0xff]
        %v613 = vld [vmem:[#allocation9 + $0x90] sm:$0xff]
        %v614 = vld [vmem:[#allocation9 + $0x98] sm:$0xff]
        %v615 = vld [vmem:[#allocation9 + $0xa0] sm:$0xff]
        %v616 = vld [vmem:[#allocation9 + $0xa8] sm:$0xff]
        %v617 = vld [vmem:[#allocation9 + $0xb0] sm:$0xff]
        %v618 = vld [vmem:[#allocation9 + $0xb8] sm:$0xff]
        %v619 = vld [vmem:[#allocation9 + $0xc0] sm:$0xff]
        %v620 = vld [vmem:[#allocation9 + $0xc8] sm:$0xff]
        %v621 = vld [vmem:[#allocation9 + $0xd0] sm:$0xff]
        %v622 = vld [vmem:[#allocation9 + $0xd8] sm:$0xff]
        %v623 = vld [vmem:[#allocation9 + $0xe0] sm:$0xff]
        %v624 = vld [vmem:[#allocation9 + $0xe8] sm:$0xff]
        %v625 = vld [vmem:[#allocation9 + $0xf0] sm:$0xff]
        %v626 = vld [vmem:[#allocation9 + $0xf8] sm:$0xff]
        %v627 = vld [vmem:[#allocation9 + $0x100] sm:$0xff]
        %v628 = vld [vmem:[#allocation9 + $0x108] sm:$0xff]
        %v629 = vld [vmem:[#allocation9 + $0x110] sm:$0xff]
        %v630 = vld [vmem:[#allocation9 + $0x118] sm:$0xff]
        %v631 = vld [vmem:[#allocation9 + $0x120] sm:$0xff]
        %v632 = vld [vmem:[#allocation9 + $0x128] sm:$0xff]
        %v633 = vld [vmem:[#allocation9 + $0x130] sm:$0xff]
        %v634 = vld [vmem:[#allocation9 + $0x138] sm:$0xff]
        %v635 = vld [vmem:[#allocation9 + $0x140] sm:$0xff]
        %v636 = vld [vmem:[#allocation9 + $0x148] sm:$0xff]
        %v637 = vld [vmem:[#allocation9 + $0x150] sm:$0xff]
        %v638 = vld [vmem:[#allocation9 + $0x158] sm:$0xff]
        %v639 = vld [vmem:[#allocation9 + $0x160] sm:$0xff]
        %v640 = vld [vmem:[#allocation9 + $0x168] sm:$0xff]
        %v641 = vld [vmem:[#allocation9 + $0x170] sm:$0xff]
        %v642 = vld [vmem:[#allocation9 + $0x178] sm:$0xff]
        %643 = vmatprep.subr.mxu0 0.0
        %644 = vmatpush1.msra.mxu0 %v595
        %645 = vmatprep.subr.mxu0 0.0
        %646 = vmatpush1.msra.mxu0 %v596
        %647 = vmatprep.subr.mxu0 0.0
        %648 = vmatpush1.msra.mxu0 %v597
        %649 = vmatprep.subr.mxu0 0.0
        %650 = vmatpush1.msra.mxu0 %v598
        %651 = vmatprep.subr.mxu0 0.0
        %652 = vmatpush1.msra.mxu0 %v599
        %653 = vmatprep.subr.mxu0 0.0
        %654 = vmatpush1.msra.mxu0 %v600
        %655 = vmatprep.subr.mxu0 0.0
        %656 = vmatpush1.msra.mxu0 %v601
        %657 = vmatprep.subr.mxu0 0.0
        %658 = vmatpush1.msra.mxu0 %v602
        %659 = vmatprep.subr.mxu0 0.0
        %660 = vmatpush1.msra.mxu0 %v603
        %661 = vmatprep.subr.mxu0 0.0
        %662 = vmatpush1.msra.mxu0 %v604
        %663 = vmatprep.subr.mxu0 0.0
        %664 = vmatpush1.msra.mxu0 %v605
        %665 = vmatprep.subr.mxu0 0.0
        %666 = vmatpush1.msra.mxu0 %v606
        %667 = vmatprep.subr.mxu0 0.0
        %668 = vmatpush1.msra.mxu0 %v607
        %669 = vmatprep.subr.mxu0 0.0
        %670 = vmatpush1.msra.mxu0 %v608
        %671 = vmatprep.subr.mxu0 0.0
        %672 = vmatpush1.msra.mxu0 %v609
        %673 = vmatprep.subr.mxu0 0.0
        %674 = vmatpush1.msra.mxu0 %v610
        %675 = vmatprep.subr.mxu0 0.0
        %676 = vmatpush1.msra.mxu0 %v611
        %677 = vmatprep.subr.mxu0 0.0
        %678 = vmatpush1.msra.mxu0 %v612
        %679 = vmatprep.subr.mxu0 0.0
        %680 = vmatpush1.msra.mxu0 %v613
        %681 = vmatprep.subr.mxu0 0.0
        %682 = vmatpush1.msra.mxu0 %v614
        %683 = vmatprep.subr.mxu0 0.0
        %684 = vmatpush1.msra.mxu0 %v615
        %685 = vmatprep.subr.mxu0 0.0
        %686 = vmatpush1.msra.mxu0 %v616
        %687 = vmatprep.subr.mxu0 0.0
        %688 = vmatpush1.msra.mxu0 %v617
        %689 = vmatprep.subr.mxu0 0.0
        %690 = vmatpush1.msra.mxu0 %v618
        %691 = vmatprep.subr.mxu0 0.0
        %692 = vmatpush1.msra.mxu0 %v619
        %693 = vmatprep.subr.mxu0 0.0
        %694 = vmatpush1.msra.mxu0 %v620
        %695 = vmatprep.subr.mxu0 0.0
        %696 = vmatpush1.msra.mxu0 %v621
        %697 = vmatprep.subr.mxu0 0.0
        %698 = vmatpush1.msra.mxu0 %v622
        %699 = vmatprep.subr.mxu0 0.0
        %700 = vmatpush1.msra.mxu0 %v623
        %701 = vmatprep.subr.mxu0 0.0
        %702 = vmatpush1.msra.mxu0 %v624
        %703 = vmatprep.subr.mxu0 0.0
        %704 = vmatpush1.msra.mxu0 %v625
        %705 = vmatprep.subr.mxu0 0.0
        %706 = vmatpush1.msra.mxu0 %v626
        %707 = vmatprep.mubr.f32.mxu0 %v593
        %708 = vmatmul.mubr.f32.gmra.mrb[0].mxu0 %v592
        %v709 = vpop.f32.mrb[0].mxu0
        %v710 = vadd.f32 0.0, %v709
        %v711 = vpop.f32.mrb[0].mxu0
        %712 = vdwg.mxu0
        %713 = vmatprep.subr.mxu0 0.0
        %714 = vmatpush1.msra.mxu0 %v627
        %715 = vmatprep.subr.mxu0 0.0
        %716 = vmatpush1.msra.mxu0 %v628
        %717 = vmatprep.subr.mxu0 0.0
        %718 = vmatpush1.msra.mxu0 %v629
        %719 = vmatprep.subr.mxu0 0.0
        %720 = vmatpush1.msra.mxu0 %v630
        %721 = vmatprep.subr.mxu0 0.0
        %722 = vmatpush1.msra.mxu0 %v631
        %723 = vmatprep.subr.mxu0 0.0
        %724 = vmatpush1.msra.mxu0 %v632
        %725 = vmatprep.subr.mxu0 0.0
        %726 = vmatpush1.msra.mxu0 %v633
        %727 = vmatprep.subr.mxu0 0.0
        %728 = vmatpush1.msra.mxu0 %v634
        %729 = vmatprep.subr.mxu0 0.0
        %730 = vmatpush1.msra.mxu0 %v635
        %731 = vmatprep.subr.mxu0 0.0
        %732 = vmatpush1.msra.mxu0 %v636
        %733 = vmatprep.subr.mxu0 0.0
        %734 = vmatpush1.msra.mxu0 %v637
        %735 = vmatprep.subr.mxu0 0.0
        %736 = vmatpush1.msra.mxu0 %v638
        %737 = vmatprep.subr.mxu0 0.0
        %738 = vmatpush1.msra.mxu0 %v639
        %739 = vmatprep.subr.mxu0 0.0
        %740 = vmatpush1.msra.mxu0 %v640
        %741 = vmatprep.subr.mxu0 0.0
        %742 = vmatpush1.msra.mxu0 %v641
        %743 = vmatprep.subr.mxu0 0.0
        %744 = vmatpush1.msra.mxu0 %v642
        %745 = vmatprep.subr.mxu0 0.0
        %746 = vmatpush1.msra.mxu0 0.0
        %747 = vmatprep.subr.mxu0 0.0
        %748 = vmatpush1.msra.mxu0 0.0
        %749 = vmatprep.subr.mxu0 0.0
        %750 = vmatpush1.msra.mxu0 0.0
        %751 = vmatprep.subr.mxu0 0.0
        %752 = vmatpush1.msra.mxu0 0.0
        %753 = vmatprep.subr.mxu0 0.0
        %754 = vmatpush1.msra.mxu0 0.0
        %755 = vmatprep.subr.mxu0 0.0
        %756 = vmatpush1.msra.mxu0 0.0
        %757 = vmatprep.subr.mxu0 0.0
        %758 = vmatpush1.msra.mxu0 0.0
        %759 = vmatprep.subr.mxu0 0.0
        %760 = vmatpush1.msra.mxu0 0.0
        %761 = vmatprep.subr.mxu0 0.0
        %762 = vmatpush1.msra.mxu0 0.0
        %763 = vmatprep.subr.mxu0 0.0
        %764 = vmatpush1.msra.mxu0 0.0
        %765 = vmatprep.subr.mxu0 0.0
        %766 = vmatpush1.msra.mxu0 0.0
        %767 = vmatprep.subr.mxu0 0.0
        %768 = vmatpush1.msra.mxu0 0.0
        %769 = vmatprep.subr.mxu0 0.0
        %770 = vmatpush1.msra.mxu0 0.0
        %771 = vmatprep.subr.mxu0 0.0
        %772 = vmatpush1.msra.mxu0 0.0
        %773 = vmatprep.subr.mxu0 0.0
        %774 = vmatpush1.msra.mxu0 0.0
        %775 = vmatprep.subr.mxu0 0.0
        %776 = vmatpush1.msra.mxu0 0.0
        %777 = vmatprep.mubr.f32.mxu0 0.0
        %778 = vmatmul.mubr.f32.gmra.mrb[0].mxu0 %v594
        %v779 = vpop.f32.mrb[0].mxu0
        %v780 = vadd.f32 %v710, %v779
        %v781 = vpop.f32.mrb[0].mxu0
        %782 = vdwg.mxu0
        %783 = vst [vmem:[%s214] sm:$0xff] %v780
        %s784 = sand.u32 %s97, 1
        %s785 = scalar_lea.sflag [#allocation6], %s784
        %s786 = sand.u32 %s97, 1
        %s787 = smul.addr %s786, 8
        %s788 = scalar_lea.vmem [#allocation10], %s787
        // Predicated region
        $region45: #{tpu_custom_call.1} parent=31 // pred_check
          %p789 = pneg %p107
        $region46: #{tpu_custom_call.1} parent=31 // pred_check_branch
          %791 = sbr.rel (%p789) target = $region48
        $region47: #{tpu_custom_call.1} parent=31 // pred_region
          %s793 = ssub.s32 128, 128
          %794 = vsyncadd %s785, %s793
          %s795 = smul.addr %s21, 128
          %s796 = scalar_lea.hbm %s3, %s795
          %s798 = sshll.u32 %s788, 4
          %s799 = int_to_ptr.vmem [resolvable:$true] %s798
          %801 = dma.vmem_to_hbm [thread:$0]  %s799, 128, %s796, %s785
        $region48: #{tpu_custom_call.1} parent=31 // pred_fallthru
          _
      $region32: #{tpu_custom_call.1} parent=5 // pred_fallthru
        _
      %p802 = scmp.le.s32.totalorder 2, %s16
      // Predicated region
      $region49: #{tpu_custom_call.1} parent=5 // pred_check
        %p803 = pneg %p802
      $region50: #{tpu_custom_call.1} parent=5 // pred_check_branch
        %805 = sbr.rel (%p803) target = $region52
      $region51: #{tpu_custom_call.1} parent=5 // pred_region
        %s806 = ssub.s32 %s16, 2
        // Predicated region
        $region53: #{tpu_custom_call.1} parent=51 // pred_check
          %p807 = pneg %p113
        $region54: #{tpu_custom_call.1} parent=51 // pred_check_branch
          %809 = sbr.rel (%p807) target = $region56
        $region55: #{tpu_custom_call.1} parent=51 // pred_region
          %s810 = sand.u32 %s98, 1
          %s811 = scalar_lea.sflag [#allocation6], %s810
          %s812 = sand.u32 %s98, 1
          %s813 = smul.addr %s812, 8
          %s814 = scalar_lea.vmem [#allocation10], %s813
          %815 = dma.done %s811, 128
        $region56: #{tpu_custom_call.1} parent=51 // pred_fallthru
          _
      $region52: #{tpu_custom_call.1} parent=5 // pred_fallthru
        _
    $region6: #{tpu_custom_call.1} parent=1 // loop_footer
      %s20 = sadd.s32 1, %s16
    $region7: #{tpu_custom_call.1} parent=1 // loop_footer_branch
      %15 = sbr.rel target = $region3
    $region8: #{tpu_custom_call.1} parent=1 // loop_exit
      _
    %816 = vsyncpa [#allocation5], 1
    %s817 = scalar_lea.sflag [#allocation5], 1
    %818 = vsyncpa %s817, 1
    %819 = vsyncpa [#allocation8], 1
    %820 = vsyncpa [#allocation6], 1
    %s821 = scalar_lea.sflag [#allocation6], 1
    %822 = vsyncpa %s821, 1

</llo_original>
